<compile_context>
chip_gen: v7x
topology: tpu7x:2x2x1
jax: 0.10.0
libtpu: 0.0.40
codegen_flags: <defaults>
</compile_context>

<pallas_src>
import functools

import jax
import jax.numpy as jnp
from jax.experimental import pallas as pl
from jax.experimental.pallas import tpu as pltpu

SEQ_LEN = 32     # input_dim
PRED_LEN = 16    # output_dim
HIDDEN = 64
_FOLD = 128 // PRED_LEN     # 8 batch rows packed per lane-dense output row

_DEFAULT_TM = 4096          # batch rows per grid step


def _round_up(n, m):
    return ((n + m - 1) // m) * m


def _mlp_kernel(x_ref, w1_ref, b1_ref, w2_ref, b2_ref, w3_ref, b3_ref,
                o_ref, y_scr):
    """One TM-row batch tile of the fused 3-layer MLP.

    x_ref : (TM, 32)  f32  -> cast to bf16 in-register (no wrapper HBM pass)
    o_ref : (TM//8, 128) f32 lane-dense slab; slab[r, 16j:16j+16] = y[8r + j]
    y_scr : (TM, 16)  f32 VMEM staging buffer for the lane-dense repack
    """
    x = x_ref[...].astype(jnp.bfloat16)                                   # (TM, 32)
    h1 = jnp.dot(x, w1_ref[...], preferred_element_type=jnp.float32) + b1_ref[...]
    h1 = jnp.maximum(h1, 0.0).astype(jnp.bfloat16)                        # (TM, 64)
    h2 = jnp.dot(h1, w2_ref[...], preferred_element_type=jnp.float32) + b2_ref[...]
    h2 = jnp.maximum(h2, 0.0).astype(jnp.bfloat16)                        # (TM, 64)
    y = jnp.dot(h2, w3_ref[...], preferred_element_type=jnp.float32) + b3_ref[...]
    y_scr[...] = y                                                        # (TM, 16) f32

    # Repack 8 batch rows per 128-lane output row so the writeback is lane-dense.
    rows = o_ref.shape[0]                       # TM // 8 (static)
    for j in range(_FOLD):                      # static unroll (8)
        o_ref[:, j * PRED_LEN:(j + 1) * PRED_LEN] = (
            y_scr[pl.ds(j, rows, stride=_FOLD), :])


@functools.partial(jax.jit, static_argnames=("tm",))
def time_series_model_forward(x, params, tm=_DEFAULT_TM):
    """x: (B, SEQ_LEN) float32, params in float32 -> (B, PRED_LEN) float32."""
    w1, b1, w2, b2, w3, b3 = params
    B = x.shape[0]

    # Weights/biases total ~28 KB; this cast is negligible and they stay
    # VMEM-resident (constant index_map) across all grid steps.
    w1b, w2b, w3b = (w.astype(jnp.bfloat16) for w in (w1, w2, w3))

    # Tile selection: keep tm a multiple of 64 so the output-slab block rows
    # (tm//8) stay sublane-divisible; shrink to one whole-batch tile when B is
    # small (block rows then equal the full slab extent).
    tm_req = max(64, _round_up(tm, 64))
    tm_eff = max(8, min(tm_req, _round_up(B, 8)))
    grid = (pl.cdiv(B, tm_eff),)                     # partial trailing block is masked
    rows_total = pl.cdiv(B, _FOLD)                   # lane-dense slab rows

    const = lambda i: (0, 0)   # same block every step -> weights stay VMEM-resident

    flops = 2 * B * (SEQ_LEN * HIDDEN + HIDDEN * HIDDEN + HIDDEN * PRED_LEN)
    bytes_accessed = (
        B * SEQ_LEN * 4 + B * PRED_LEN * 4                               # x f32 + out f32
        + (SEQ_LEN * HIDDEN + HIDDEN * HIDDEN + HIDDEN * PRED_LEN) * 2   # weights bf16
        + (2 * HIDDEN + PRED_LEN) * 4)                                   # biases f32

    out_slab = pl.pallas_call(
        _mlp_kernel,
        out_shape=jax.ShapeDtypeStruct((rows_total, 128), jnp.float32),
        grid_spec=pltpu.PrefetchScalarGridSpec(
            num_scalar_prefetch=0,
            grid=grid,
            in_specs=[
                pl.BlockSpec((tm_eff, SEQ_LEN), lambda i: (i, 0)),   # x: streamed f32
                pl.BlockSpec((SEQ_LEN, HIDDEN), const),              # w1: resident
                pl.BlockSpec((1, HIDDEN), const),                    # b1
                pl.BlockSpec((HIDDEN, HIDDEN), const),               # w2
                pl.BlockSpec((1, HIDDEN), const),                    # b2
                pl.BlockSpec((HIDDEN, PRED_LEN), const),             # w3
                pl.BlockSpec((1, PRED_LEN), const),                  # b3
            ],
            out_specs=pl.BlockSpec((tm_eff // _FOLD, 128), lambda i: (i, 0)),
            scratch_shapes=[pltpu.VMEM((tm_eff, PRED_LEN), jnp.float32)],
        ),
        compiler_params=pltpu.CompilerParams(
            dimension_semantics=("parallel",)),                      # megacore on v7x
        cost_estimate=pl.CostEstimate(
            flops=flops, transcendentals=0, bytes_accessed=bytes_accessed),
    )(x, w1b, b1, w2b, b2, w3b, b3)

    # (rows,128) f32 row-major == (rows*8,16) row-major: free relayout.  The
    # slice only drops the <8-row tail (no-op when B % 8 == 0).
    out = out_slab.reshape(rows_total * _FOLD, PRED_LEN)
    return out[:B]


def init_params(key):
    """Deterministic init mimicking nn.Linear default (uniform +-1/sqrt(fan_in))."""
    def linear(key, fan_in, fan_out):
        kw, kb = jax.random.split(key)
        bound = 1.0 / jnp.sqrt(jnp.float32(fan_in))
        # Stored as (in, out): equals the PyTorch weight (out, in) transposed.
        w = jax.random.uniform(kw, (fan_in, fan_out), jnp.float32, -bound, bound)
        b = jax.random.uniform(kb, (1, fan_out), jnp.float32, -bound, bound)
        return w, b

    k1, k2, k3 = jax.random.split(key, 3)
    w1, b1 = linear(k1, SEQ_LEN, HIDDEN)
    w2, b2 = linear(k2, HIDDEN, HIDDEN)
    w3, b3 = linear(k3, HIDDEN, PRED_LEN)
    return (w1, b1, w2, b2, w3, b3)


def reference_forward(x, params):
    """Pure-JAX reference with the same bf16-operand / f32-accumulate numerics
    as the kernel (bias add + ReLU in f32)."""
    w1, b1, w2, b2, w3, b3 = params
    xb = x.astype(jnp.bfloat16)
    w1b, w2b, w3b = (w.astype(jnp.bfloat16) for w in (w1, w2, w3))
    h1 = jnp.maximum(jnp.dot(xb, w1b, preferred_element_type=jnp.float32) + b1, 0.0)
    h1 = h1.astype(jnp.bfloat16)
    h2 = jnp.maximum(jnp.dot(h1, w2b, preferred_element_type=jnp.float32) + b2, 0.0)
    h2 = h2.astype(jnp.bfloat16)
    return jnp.dot(h2, w3b, preferred_element_type=jnp.float32) + b3


if __name__ == "__main__":
    key = jax.random.PRNGKey(0)
    kx, kp = jax.random.split(key)
    params = init_params(kp)

    # Small batch of windows, each window is SEQ_LEN samples.
    B = 8
    x = jax.random.normal(kx, (B, SEQ_LEN), jnp.float32)
    out = jax.block_until_ready(time_series_model_forward(x, params))
    ref = reference_forward(x, params)
    assert out.shape == (B, PRED_LEN)
    assert jnp.allclose(out, ref, atol=2e-3, rtol=2e-3), "mismatch (small B)"

    # Larger batch, B not a multiple of 8: single-tile path with masked tail.
    B2 = 1003
    x2 = jax.random.normal(kx, (B2, SEQ_LEN), jnp.float32)
    ref2 = reference_forward(x2, params)
    out2 = jax.block_until_ready(time_series_model_forward(x2, params))
    assert out2.shape == (B2, PRED_LEN)
    assert jnp.allclose(out2, ref2, atol=2e-3, rtol=2e-3), "mismatch (large B)"

    # Force a multi-step grid with partial trailing input AND output blocks.
    out3 = jax.block_until_ready(time_series_model_forward(x2, params, tm=256))
    assert out3.shape == (B2, PRED_LEN)
    assert jnp.allclose(out3, ref2, atol=2e-3, rtol=2e-3), "mismatch (tiled B)"

    print("KERNEL_OK")
</pallas_src>

<mosaic_0001>
module attributes {stable_mosaic.version = 11 : i64} {
  func.func @_mlp_kernel(%arg0: i32, %arg1: memref<8x32xf32, #tpu.memory_space<vmem>>, %arg2: memref<32x64xbf16, #tpu.memory_space<vmem>>, %arg3: memref<1x64xf32, #tpu.memory_space<vmem>>, %arg4: memref<64x64xbf16, #tpu.memory_space<vmem>>, %arg5: memref<1x64xf32, #tpu.memory_space<vmem>>, %arg6: memref<64x16xbf16, #tpu.memory_space<vmem>>, %arg7: memref<1x16xf32, #tpu.memory_space<vmem>>, %arg8: memref<1x128xf32, #tpu.memory_space<vmem>>, %arg9: memref<8x16xf32, #tpu.memory_space<vmem>>) attributes {dimension_semantics = [#tpu.dimension_semantics<parallel>], iteration_bounds = array<i64: 1>, scalar_prefetch = 0 : i64, scratch_operands = 1 : i64, tpu.core_type = #tpu.core_type<tc>, window_params = [{transform_indices = @transform_0, window_bounds = array<i64: 8, 32>}, {pipeline_mode = #tpu.pipeline_mode<synchronous>, transform_indices = @transform_1, window_bounds = array<i64: 32, 64>}, {pipeline_mode = #tpu.pipeline_mode<synchronous>, transform_indices = @transform_2, window_bounds = array<i64: 1, 64>}, {pipeline_mode = #tpu.pipeline_mode<synchronous>, transform_indices = @transform_3, window_bounds = array<i64: 64, 64>}, {pipeline_mode = #tpu.pipeline_mode<synchronous>, transform_indices = @transform_4, window_bounds = array<i64: 1, 64>}, {pipeline_mode = #tpu.pipeline_mode<synchronous>, transform_indices = @transform_5, window_bounds = array<i64: 64, 16>}, {pipeline_mode = #tpu.pipeline_mode<synchronous>, transform_indices = @transform_6, window_bounds = array<i64: 1, 16>}, {transform_indices = @transform_7, window_bounds = array<i64: 1, 128>}]} {
    %c0 = arith.constant 0 : index
    %c0_0 = arith.constant 0 : index
    %0 = vector.load %arg1[%c0, %c0_0] : memref<8x32xf32, #tpu.memory_space<vmem>>, vector<8x32xf32>
    %1 = arith.truncf %0 : vector<8x32xf32> to vector<8x32xbf16>
    %c0_1 = arith.constant 0 : index
    %c0_2 = arith.constant 0 : index
    %2 = vector.load %arg2[%c0_1, %c0_2] : memref<32x64xbf16, #tpu.memory_space<vmem>>, vector<32x64xbf16>
    %cst = arith.constant dense<0.000000e+00> : vector<8x64xf32>
    %3 = tpu.matmul %1, %2, %cst {dimension_numbers = #tpu.dot_dimension_numbers<[1], [0], [0], [1], [0, 0, 1, 1], [], []>} : vector<8x32xbf16>, vector<32x64xbf16>, vector<8x64xf32> -> vector<8x64xf32>
    %c0_3 = arith.constant 0 : index
    %c0_4 = arith.constant 0 : index
    %4 = vector.load %arg3[%c0_3, %c0_4] : memref<1x64xf32, #tpu.memory_space<vmem>>, vector<1x64xf32>
    %5 = vector.broadcast %4 : vector<1x64xf32> to vector<8x64xf32>
    %6 = arith.addf %3, %5 : vector<8x64xf32>
    %cst_5 = arith.constant 0.000000e+00 : f32
    %7 = vector.broadcast %cst_5 : f32 to vector<8x64xf32>
    %8 = arith.maximumf %6, %7 : vector<8x64xf32>
    %9 = arith.truncf %8 : vector<8x64xf32> to vector<8x64xbf16>
    %c0_6 = arith.constant 0 : index
    %c0_7 = arith.constant 0 : index
    %10 = vector.load %arg4[%c0_6, %c0_7] : memref<64x64xbf16, #tpu.memory_space<vmem>>, vector<64x64xbf16>
    %cst_8 = arith.constant dense<0.000000e+00> : vector<8x64xf32>
    %11 = tpu.matmul %9, %10, %cst_8 {dimension_numbers = #tpu.dot_dimension_numbers<[1], [0], [0], [1], [0, 0, 1, 1], [], []>} : vector<8x64xbf16>, vector<64x64xbf16>, vector<8x64xf32> -> vector<8x64xf32>
    %c0_9 = arith.constant 0 : index
    %c0_10 = arith.constant 0 : index
    %12 = vector.load %arg5[%c0_9, %c0_10] : memref<1x64xf32, #tpu.memory_space<vmem>>, vector<1x64xf32>
    %13 = vector.broadcast %12 : vector<1x64xf32> to vector<8x64xf32>
    %14 = arith.addf %11, %13 : vector<8x64xf32>
    %cst_11 = arith.constant 0.000000e+00 : f32
    %15 = vector.broadcast %cst_11 : f32 to vector<8x64xf32>
    %16 = arith.maximumf %14, %15 : vector<8x64xf32>
    %17 = arith.truncf %16 : vector<8x64xf32> to vector<8x64xbf16>
    %c0_12 = arith.constant 0 : index
    %c0_13 = arith.constant 0 : index
    %18 = vector.load %arg6[%c0_12, %c0_13] : memref<64x16xbf16, #tpu.memory_space<vmem>>, vector<64x16xbf16>
    %cst_14 = arith.constant dense<0.000000e+00> : vector<8x16xf32>
    %19 = tpu.matmul %17, %18, %cst_14 {dimension_numbers = #tpu.dot_dimension_numbers<[1], [0], [0], [1], [0, 0, 1, 1], [], []>} : vector<8x64xbf16>, vector<64x16xbf16>, vector<8x16xf32> -> vector<8x16xf32>
    %c0_15 = arith.constant 0 : index
    %c0_16 = arith.constant 0 : index
    %20 = vector.load %arg7[%c0_15, %c0_16] : memref<1x16xf32, #tpu.memory_space<vmem>>, vector<1x16xf32>
    %21 = vector.broadcast %20 : vector<1x16xf32> to vector<8x16xf32>
    %22 = arith.addf %19, %21 : vector<8x16xf32>
    %c0_17 = arith.constant 0 : index
    %c0_18 = arith.constant 0 : index
    %23 = vector.load %arg9[%c0_17, %c0_18] : memref<8x16xf32, #tpu.memory_space<vmem>>, vector<8x16xf32>
    tpu.vector_store %arg9[%c0_17, %c0_18], %22 {strides = array<i32>} : memref<8x16xf32, #tpu.memory_space<vmem>>, vector<8x16xf32>,
    %c0_19 = arith.constant 0 : index
    %c0_20 = arith.constant 0 : index
    %24 = tpu.strided_load %arg9[%c0_19, %c0_20] {strides = array<i32: 8, 1>} : memref<8x16xf32, #tpu.memory_space<vmem>>, vector<1x16xf32>
    %c0_21 = arith.constant 0 : index
    %c0_22 = arith.constant 0 : index
    %25 = vector.load %arg8[%c0_21, %c0_22] : memref<1x128xf32, #tpu.memory_space<vmem>>, vector<1x16xf32>
    tpu.vector_store %arg8[%c0_21, %c0_22], %24 {strides = array<i32>} : memref<1x128xf32, #tpu.memory_space<vmem>>, vector<1x16xf32>,
    %c1 = arith.constant 1 : index
    %c0_23 = arith.constant 0 : index
    %26 = tpu.strided_load %arg9[%c1, %c0_23] {strides = array<i32: 8, 1>} : memref<8x16xf32, #tpu.memory_space<vmem>>, vector<1x16xf32>
    %c0_24 = arith.constant 0 : index
    %c16 = arith.constant 16 : index
    %27 = vector.load %arg8[%c0_24, %c16] : memref<1x128xf32, #tpu.memory_space<vmem>>, vector<1x16xf32>
    tpu.vector_store %arg8[%c0_24, %c16], %26 {strides = array<i32>} : memref<1x128xf32, #tpu.memory_space<vmem>>, vector<1x16xf32>,
    %c2 = arith.constant 2 : index
    %c0_25 = arith.constant 0 : index
    %28 = tpu.strided_load %arg9[%c2, %c0_25] {strides = array<i32: 8, 1>} : memref<8x16xf32, #tpu.memory_space<vmem>>, vector<1x16xf32>
    %c0_26 = arith.constant 0 : index
    %c32 = arith.constant 32 : index
    %29 = vector.load %arg8[%c0_26, %c32] : memref<1x128xf32, #tpu.memory_space<vmem>>, vector<1x16xf32>
    tpu.vector_store %arg8[%c0_26, %c32], %28 {strides = array<i32>} : memref<1x128xf32, #tpu.memory_space<vmem>>, vector<1x16xf32>,
    %c3 = arith.constant 3 : index
    %c0_27 = arith.constant 0 : index
    %30 = tpu.strided_load %arg9[%c3, %c0_27] {strides = array<i32: 8, 1>} : memref<8x16xf32, #tpu.memory_space<vmem>>, vector<1x16xf32>
    %c0_28 = arith.constant 0 : index
    %c48 = arith.constant 48 : index
    %31 = vector.load %arg8[%c0_28, %c48] : memref<1x128xf32, #tpu.memory_space<vmem>>, vector<1x16xf32>
    tpu.vector_store %arg8[%c0_28, %c48], %30 {strides = array<i32>} : memref<1x128xf32, #tpu.memory_space<vmem>>, vector<1x16xf32>,
    %c4 = arith.constant 4 : index
    %c0_29 = arith.constant 0 : index
    %32 = tpu.strided_load %arg9[%c4, %c0_29] {strides = array<i32: 8, 1>} : memref<8x16xf32, #tpu.memory_space<vmem>>, vector<1x16xf32>
    %c0_30 = arith.constant 0 : index
    %c64 = arith.constant 64 : index
    %33 = vector.load %arg8[%c0_30, %c64] : memref<1x128xf32, #tpu.memory_space<vmem>>, vector<1x16xf32>
    tpu.vector_store %arg8[%c0_30, %c64], %32 {strides = array<i32>} : memref<1x128xf32, #tpu.memory_space<vmem>>, vector<1x16xf32>,
    %c5 = arith.constant 5 : index
    %c0_31 = arith.constant 0 : index
    %34 = tpu.strided_load %arg9[%c5, %c0_31] {strides = array<i32: 8, 1>} : memref<8x16xf32, #tpu.memory_space<vmem>>, vector<1x16xf32>
    %c0_32 = arith.constant 0 : index
    %c80 = arith.constant 80 : index
    %35 = vector.load %arg8[%c0_32, %c80] : memref<1x128xf32, #tpu.memory_space<vmem>>, vector<1x16xf32>
    tpu.vector_store %arg8[%c0_32, %c80], %34 {strides = array<i32>} : memref<1x128xf32, #tpu.memory_space<vmem>>, vector<1x16xf32>,
    %c6 = arith.constant 6 : index
    %c0_33 = arith.constant 0 : index
    %36 = tpu.strided_load %arg9[%c6, %c0_33] {strides = array<i32: 8, 1>} : memref<8x16xf32, #tpu.memory_space<vmem>>, vector<1x16xf32>
    %c0_34 = arith.constant 0 : index
    %c96 = arith.constant 96 : index
    %37 = vector.load %arg8[%c0_34, %c96] : memref<1x128xf32, #tpu.memory_space<vmem>>, vector<1x16xf32>
    tpu.vector_store %arg8[%c0_34, %c96], %36 {strides = array<i32>} : memref<1x128xf32, #tpu.memory_space<vmem>>, vector<1x16xf32>,
    %c7 = arith.constant 7 : index
    %c0_35 = arith.constant 0 : index
    %38 = tpu.strided_load %arg9[%c7, %c0_35] {strides = array<i32: 8, 1>} : memref<8x16xf32, #tpu.memory_space<vmem>>, vector<1x16xf32>
    %c0_36 = arith.constant 0 : index
    %c112 = arith.constant 112 : index
    %39 = vector.load %arg8[%c0_36, %c112] : memref<1x128xf32, #tpu.memory_space<vmem>>, vector<1x16xf32>
    tpu.vector_store %arg8[%c0_36, %c112], %38 {strides = array<i32>} : memref<1x128xf32, #tpu.memory_space<vmem>>, vector<1x16xf32>,
    return
  }
  func.func @transform_0(%arg0: i32) -> (i32, i32) {
    %c0_i32 = arith.constant 0 : i32
    %c0_i32_0 = arith.constant 0 : i32
    return %arg0, %c0_i32 : i32, i32
  }
  func.func @transform_1(%arg0: i32) -> (i32, i32) {
    %c0_i32 = arith.constant 0 : i32
    %c0_i32_0 = arith.constant 0 : i32
    %c0_i32_1 = arith.constant 0 : i32
    return %c0_i32, %c0_i32_0 : i32, i32
  }
  func.func @transform_2(%arg0: i32) -> (i32, i32) {
    %c0_i32 = arith.constant 0 : i32
    %c0_i32_0 = arith.constant 0 : i32
    %c0_i32_1 = arith.constant 0 : i32
    return %c0_i32, %c0_i32_0 : i32, i32
  }
  func.func @transform_3(%arg0: i32) -> (i32, i32) {
    %c0_i32 = arith.constant 0 : i32
    %c0_i32_0 = arith.constant 0 : i32
    %c0_i32_1 = arith.constant 0 : i32
    return %c0_i32, %c0_i32_0 : i32, i32
  }
  func.func @transform_4(%arg0: i32) -> (i32, i32) {
    %c0_i32 = arith.constant 0 : i32
    %c0_i32_0 = arith.constant 0 : i32
    %c0_i32_1 = arith.constant 0 : i32
    return %c0_i32, %c0_i32_0 : i32, i32
  }
  func.func @transform_5(%arg0: i32) -> (i32, i32) {
    %c0_i32 = arith.constant 0 : i32
    %c0_i32_0 = arith.constant 0 : i32
    %c0_i32_1 = arith.constant 0 : i32
    return %c0_i32, %c0_i32_0 : i32, i32
  }
  func.func @transform_6(%arg0: i32) -> (i32, i32) {
    %c0_i32 = arith.constant 0 : i32
    %c0_i32_0 = arith.constant 0 : i32
    %c0_i32_1 = arith.constant 0 : i32
    return %c0_i32, %c0_i32_0 : i32, i32
  }
  func.func @transform_7(%arg0: i32) -> (i32, i32) {
    %c0_i32 = arith.constant 0 : i32
    %c0_i32_0 = arith.constant 0 : i32
    return %arg0, %c0_i32 : i32, i32
  }
}

</mosaic_0001>

<llo_original>
// kernel: time_series_model_forward.1
$region0: #{time_series_model_forward.1}
  #allocation0 [shape = 'u32[]', space=smem, size = 0x4, offset = 0x4, fixed_abs, tag = 'smem constant byte address 0x4 - core index']
  #allocation1 [shape = 'u32[144,128]{1,0:T(1,128)}', space=vmem, size = 0x12000, scoped, tag = 'internal scratch']
  #allocation2 [shape = 'f32[8,16]{1,0:T(8,128)}', space=vmem, size = 0x1000, scoped, tag = 'scratch operand']
  %s0 = inlined_call_operand.vmem [shape: f32[8,32], index: 0, kind: input, shape index: {}]
  %s1 = inlined_call_operand.vmem [shape: bf16[32,64], index: 1, kind: input, shape index: {}]
  %s2 = inlined_call_operand.vmem [shape: f32[1,64], index: 2, kind: input, shape index: {}]
  %s3 = inlined_call_operand.vmem [shape: bf16[64,64], index: 3, kind: input, shape index: {}]
  %s4 = inlined_call_operand.vmem [shape: f32[1,64], index: 4, kind: input, shape index: {}]
  %s5 = inlined_call_operand.vmem [shape: bf16[64,16], index: 5, kind: input, shape index: {}]
  %s6 = inlined_call_operand.vmem [shape: f32[1,16], index: 6, kind: input, shape index: {}]
  %s7 = inlined_call_operand.vmem [shape: f32[1,128], index: 7, kind: output, shape index: {}]
  %s8 = sld [smem:[#allocation0]]
  $region38: #{time_series_model_forward.1} parent=0
    _
  %s10 = ssub.s32 1, %s8
  %s11 = scalar_select 0, %s10, %s8
  // Predicated region
  $region2: #{time_series_model_forward.1} parent=0 // pred_check
    _
  $region3: #{time_series_model_forward.1} parent=0 // pred_check_branch
    %13 = sbr.rel (0) target = $region5
  $region4: #{time_series_model_forward.1} parent=0 // pred_region
    _
  $region5: #{time_series_model_forward.1} parent=0 // pred_fallthru
    _
  // Predicated region
  $region6: #{time_series_model_forward.1} parent=0 // pred_check
    _
  $region7: #{time_series_model_forward.1} parent=0 // pred_check_branch
    %15 = sbr.rel (0) target = $region9
  $region8: #{time_series_model_forward.1} parent=0 // pred_region
    _
  $region9: #{time_series_model_forward.1} parent=0 // pred_fallthru
    _
  // Predicated region
  $region10: #{time_series_model_forward.1} parent=0 // pred_check
    _
  $region11: #{time_series_model_forward.1} parent=0 // pred_check_branch
    %17 = sbr.rel (0) target = $region13
  $region12: #{time_series_model_forward.1} parent=0 // pred_region
    _
  $region13: #{time_series_model_forward.1} parent=0 // pred_fallthru
    _
  // Predicated region
  $region14: #{time_series_model_forward.1} parent=0 // pred_check
    _
  $region15: #{time_series_model_forward.1} parent=0 // pred_check_branch
    %19 = sbr.rel (0) target = $region17
  $region16: #{time_series_model_forward.1} parent=0 // pred_region
    _
  $region17: #{time_series_model_forward.1} parent=0 // pred_fallthru
    _
  // Predicated region
  $region18: #{time_series_model_forward.1} parent=0 // pred_check
    _
  $region19: #{time_series_model_forward.1} parent=0 // pred_check_branch
    %21 = sbr.rel (0) target = $region21
  $region20: #{time_series_model_forward.1} parent=0 // pred_region
    _
  $region21: #{time_series_model_forward.1} parent=0 // pred_fallthru
    _
  // Predicated region
  $region22: #{time_series_model_forward.1} parent=0 // pred_check
    _
  $region23: #{time_series_model_forward.1} parent=0 // pred_check_branch
    %23 = sbr.rel (0) target = $region25
  $region24: #{time_series_model_forward.1} parent=0 // pred_region
    _
  $region25: #{time_series_model_forward.1} parent=0 // pred_fallthru
    _
  // Predicated region
  $region26: #{time_series_model_forward.1} parent=0 // pred_check
    _
  $region27: #{time_series_model_forward.1} parent=0 // pred_check_branch
    %25 = sbr.rel (0) target = $region29
  $region28: #{time_series_model_forward.1} parent=0 // pred_region
    _
  $region29: #{time_series_model_forward.1} parent=0 // pred_fallthru
    _
  %v27 = vld [vmem:[%s0] sm:$0xff]
  %v28 = vpack.c.bf16 %v27, %v27
  %v29 = vld [vmem:[%s1] sm:$0xf]
  %v30 = vld [vmem:[%s1 + $0x4] sm:$0xf]
  %v31 = vld [vmem:[%s1 + $0x8] sm:$0xf]
  %v32 = vld [vmem:[%s1 + $0xc] sm:$0xf]
  %v33 = vld [vmem:[%s2] sm:$0x1]
  %v35 = vlaneseq
  %v36 = vshrl.u32 %v35, 7
  %v37 = vsub.s32 0, %v36
  %v38 = vrot.slane %v33, %v37
  %v44 = vunpack.c.l.b16 %v29
  %v45 = vunpack.c.l.b16 %v30
  %v46 = vunpack.c.l.b16 %v31
  %v47 = vunpack.c.l.b16 %v32
  %v48 = vpack.c.b16 %v45, %v44
  %v49 = vpack.c.b16 %v47, %v46
  %vm52 = vcmask 261120
  %v54 = vsel %vm52, %v28, 0
  %56 = vmatprep.subr.bf16.mxu0 0
  %57 = vmatpush1.bf16.msra.mxu0 %v48
  %58 = vmatprep.subr.bf16.mxu0 0
  %59 = vmatpush1.bf16.msra.mxu0 %v49
  %60 = vmatprep.subr.bf16.mxu0 0
  %61 = vmatpush1.bf16.msra.mxu0 0
  %62 = vmatprep.subr.bf16.mxu0 0
  %63 = vmatpush1.bf16.msra.mxu0 0
  %64 = vmatprep.subr.bf16.mxu0 0
  %65 = vmatpush1.bf16.msra.mxu0 0
  %66 = vmatprep.subr.bf16.mxu0 0
  %67 = vmatpush1.bf16.msra.mxu0 0
  %68 = vmatprep.subr.bf16.mxu0 0
  %69 = vmatpush1.bf16.msra.mxu0 0
  %70 = vmatprep.subr.bf16.mxu0 0
  %71 = vmatpush1.bf16.msra.mxu0 0
  %72 = vmatprep.subr.bf16.mxu0 0
  %73 = vmatpush1.bf16.msra.mxu0 0
  %74 = vmatprep.subr.bf16.mxu0 0
  %75 = vmatpush1.bf16.msra.mxu0 0
  %76 = vmatprep.subr.bf16.mxu0 0
  %77 = vmatpush1.bf16.msra.mxu0 0
  %78 = vmatprep.subr.bf16.mxu0 0
  %79 = vmatpush1.bf16.msra.mxu0 0
  %80 = vmatprep.subr.bf16.mxu0 0
  %81 = vmatpush1.bf16.msra.mxu0 0
  %82 = vmatprep.subr.bf16.mxu0 0
  %83 = vmatpush1.bf16.msra.mxu0 0
  %84 = vmatprep.subr.bf16.mxu0 0
  %85 = vmatpush1.bf16.msra.mxu0 0
  %86 = vmatprep.subr.bf16.mxu0 0
  %87 = vmatpush1.bf16.msra.mxu0 0
  %88 = vmatprep.mubr.bf16.mxu0 0
  %89 = vmatmul.mubr.bf16.gmra.mrb[0].mxu0 %v54
  %v90 = vpop.f32.mrb[0].mxu0
  %v91 = vadd.f32 %v38, %v90
  %v92 = vpop.f32.mrb[0].mxu0
  %v93 = vpop.f32.mrb[0].mxu0
  %v94 = vpop.f32.mrb[0].mxu0
  %95 = vdwg.mxu0
  %v96 = vmax.f32 %v91, 0.0
  %v97 = vpack.c.bf16 %v96, %v96
  %v98 = vld [vmem:[%s3] sm:$0xf]
  %v99 = vld [vmem:[%s3 + $0x4] sm:$0xf]
  %v100 = vld [vmem:[%s3 + $0x8] sm:$0xf]
  %v101 = vld [vmem:[%s3 + $0xc] sm:$0xf]
  %v102 = vld [vmem:[%s3 + $0x10] sm:$0xf]
  %v103 = vld [vmem:[%s3 + $0x14] sm:$0xf]
  %v104 = vld [vmem:[%s3 + $0x18] sm:$0xf]
  %v105 = vld [vmem:[%s3 + $0x1c] sm:$0xf]
  %v106 = vld [vmem:[%s4] sm:$0x1]
  %v108 = vlaneseq
  %v109 = vshrl.u32 %v108, 7
  %v110 = vsub.s32 0, %v109
  %v111 = vrot.slane %v106, %v110
  %v121 = vunpack.c.l.b16 %v98
  %v122 = vunpack.c.l.b16 %v99
  %v123 = vunpack.c.l.b16 %v100
  %v124 = vunpack.c.l.b16 %v101
  %v125 = vunpack.c.l.b16 %v102
  %v126 = vunpack.c.l.b16 %v103
  %v127 = vunpack.c.l.b16 %v104
  %v128 = vunpack.c.l.b16 %v105
  %v129 = vpack.c.b16 %v122, %v121
  %v130 = vpack.c.b16 %v124, %v123
  %v131 = vpack.c.b16 %v126, %v125
  %v132 = vpack.c.b16 %v128, %v127
  %vm137 = vcmask 523264
  %v139 = vsel %vm137, %v97, 0
  %141 = vmatprep.subr.bf16.mxu0 0
  %142 = vmatpush1.bf16.msra.mxu0 %v129
  %143 = vmatprep.subr.bf16.mxu0 0
  %144 = vmatpush1.bf16.msra.mxu0 %v130
  %145 = vmatprep.subr.bf16.mxu0 0
  %146 = vmatpush1.bf16.msra.mxu0 %v131
  %147 = vmatprep.subr.bf16.mxu0 0
  %148 = vmatpush1.bf16.msra.mxu0 %v132
  %149 = vmatprep.subr.bf16.mxu0 0
  %150 = vmatpush1.bf16.msra.mxu0 0
  %151 = vmatprep.subr.bf16.mxu0 0
  %152 = vmatpush1.bf16.msra.mxu0 0
  %153 = vmatprep.subr.bf16.mxu0 0
  %154 = vmatpush1.bf16.msra.mxu0 0
  %155 = vmatprep.subr.bf16.mxu0 0
  %156 = vmatpush1.bf16.msra.mxu0 0
  %157 = vmatprep.subr.bf16.mxu0 0
  %158 = vmatpush1.bf16.msra.mxu0 0
  %159 = vmatprep.subr.bf16.mxu0 0
  %160 = vmatpush1.bf16.msra.mxu0 0
  %161 = vmatprep.subr.bf16.mxu0 0
  %162 = vmatpush1.bf16.msra.mxu0 0
  %163 = vmatprep.subr.bf16.mxu0 0
  %164 = vmatpush1.bf16.msra.mxu0 0
  %165 = vmatprep.subr.bf16.mxu0 0
  %166 = vmatpush1.bf16.msra.mxu0 0
  %167 = vmatprep.subr.bf16.mxu0 0
  %168 = vmatpush1.bf16.msra.mxu0 0
  %169 = vmatprep.subr.bf16.mxu0 0
  %170 = vmatpush1.bf16.msra.mxu0 0
  %171 = vmatprep.subr.bf16.mxu0 0
  %172 = vmatpush1.bf16.msra.mxu0 0
  %173 = vmatprep.mubr.bf16.mxu0 0
  %174 = vmatmul.mubr.bf16.gmra.mrb[0].mxu0 %v139
  %v175 = vpop.f32.mrb[0].mxu0
  %v176 = vadd.f32 %v111, %v175
  %v177 = vpop.f32.mrb[0].mxu0
  %v178 = vpop.f32.mrb[0].mxu0
  %v179 = vpop.f32.mrb[0].mxu0
  %180 = vdwg.mxu0
  %v181 = vmax.f32 %v176, 0.0
  %v182 = vpack.c.bf16 %v181, %v181
  %v183 = vld [vmem:[%s5] sm:$0xf]
  %v184 = vld [vmem:[%s5 + $0x4] sm:$0xf]
  %v185 = vld [vmem:[%s5 + $0x8] sm:$0xf]
  %v186 = vld [vmem:[%s5 + $0xc] sm:$0xf]
  %v187 = vld [vmem:[%s5 + $0x10] sm:$0xf]
  %v188 = vld [vmem:[%s5 + $0x14] sm:$0xf]
  %v189 = vld [vmem:[%s5 + $0x18] sm:$0xf]
  %v190 = vld [vmem:[%s5 + $0x1c] sm:$0xf]
  %v191 = vld [vmem:[%s6] sm:$0x1]
  %v193 = vlaneseq
  %v194 = vshrl.u32 %v193, 7
  %v195 = vsub.s32 0, %v194
  %v196 = vrot.slane %v191, %v195
  %v206 = vunpack.c.l.b16 %v183
  %v207 = vunpack.c.l.b16 %v184
  %v208 = vunpack.c.l.b16 %v185
  %v209 = vunpack.c.l.b16 %v186
  %v210 = vunpack.c.l.b16 %v187
  %v211 = vunpack.c.l.b16 %v188
  %v212 = vunpack.c.l.b16 %v189
  %v213 = vunpack.c.l.b16 %v190
  %v214 = vpack.c.b16 %v207, %v206
  %v215 = vpack.c.b16 %v209, %v208
  %v216 = vpack.c.b16 %v211, %v210
  %v217 = vpack.c.b16 %v213, %v212
  %v223 = vsel %vm137, %v182, 0
  %225 = vmatprep.subr.bf16.mxu0 0
  %226 = vmatpush1.bf16.msra.mxu0 %v214
  %227 = vmatprep.subr.bf16.mxu0 0
  %228 = vmatpush1.bf16.msra.mxu0 %v215
  %229 = vmatprep.subr.bf16.mxu0 0
  %230 = vmatpush1.bf16.msra.mxu0 %v216
  %231 = vmatprep.subr.bf16.mxu0 0
  %232 = vmatpush1.bf16.msra.mxu0 %v217
  %233 = vmatprep.subr.bf16.mxu0 0
  %234 = vmatpush1.bf16.msra.mxu0 0
  %235 = vmatprep.subr.bf16.mxu0 0
  %236 = vmatpush1.bf16.msra.mxu0 0
  %237 = vmatprep.subr.bf16.mxu0 0
  %238 = vmatpush1.bf16.msra.mxu0 0
  %239 = vmatprep.subr.bf16.mxu0 0
  %240 = vmatpush1.bf16.msra.mxu0 0
  %241 = vmatprep.subr.bf16.mxu0 0
  %242 = vmatpush1.bf16.msra.mxu0 0
  %243 = vmatprep.subr.bf16.mxu0 0
  %244 = vmatpush1.bf16.msra.mxu0 0
  %245 = vmatprep.subr.bf16.mxu0 0
  %246 = vmatpush1.bf16.msra.mxu0 0
  %247 = vmatprep.subr.bf16.mxu0 0
  %248 = vmatpush1.bf16.msra.mxu0 0
  %249 = vmatprep.subr.bf16.mxu0 0
  %250 = vmatpush1.bf16.msra.mxu0 0
  %251 = vmatprep.subr.bf16.mxu0 0
  %252 = vmatpush1.bf16.msra.mxu0 0
  %253 = vmatprep.subr.bf16.mxu0 0
  %254 = vmatpush1.bf16.msra.mxu0 0
  %255 = vmatprep.subr.bf16.mxu0 0
  %256 = vmatpush1.bf16.msra.mxu0 0
  %257 = vmatprep.mubr.bf16.mxu0 0
  %258 = vmatmul.mubr.bf16.gmra.mrb[0].mxu0 %v223
  %v259 = vpop.f32.mrb[0].mxu0
  %v260 = vadd.f32 %v196, %v259
  %v261 = vpop.f32.mrb[0].mxu0
  %v262 = vpop.f32.mrb[0].mxu0
  %v263 = vpop.f32.mrb[0].mxu0
  %264 = vdwg.mxu0
  %vm265 = vcmask 130048
  %266 = vst.msk [vmem:[#allocation2] sm:$0xff] %vm265, %v260
  %v267 = vld [vmem:[#allocation2] ss:$8 sm:$0x1]
  %vm268 = vcmask 122880
  %269 = vst.msk [vmem:[%s7] sm:$0x1] %vm268, %v267
  %s270 = scalar_lea.vmem [#allocation2], 1
  %v271 = vld [vmem:[%s270] ss:$8 sm:$0x1]
  %273 = vrot.lane.b32.xlu0 %v271, 16
  %v274 = vpop.permute.xlu0 %273
  %vm276 = vcmask 254080
  %277 = vst.msk [vmem:[%s7] sm:$0x1] %vm276, %v274
  %s278 = scalar_lea.vmem [#allocation2], 2
  %v279 = vld [vmem:[%s278] ss:$8 sm:$0x1]
  %281 = vrot.lane.b32.xlu0 %v279, 32
  %v282 = vpop.permute.xlu0 %281
  %vm284 = vcmask 385280
  %285 = vst.msk [vmem:[%s7] sm:$0x1] %vm284, %v282
  %s286 = scalar_lea.vmem [#allocation2], 3
  %v287 = vld [vmem:[%s286] ss:$8 sm:$0x1]
  %289 = vrot.lane.b32.xlu0 %v287, 48
  %v290 = vpop.permute.xlu0 %289
  %vm292 = vcmask 516480
  %293 = vst.msk [vmem:[%s7] sm:$0x1] %vm292, %v290
  %s294 = scalar_lea.vmem [#allocation2], 4
  %v295 = vld [vmem:[%s294] ss:$8 sm:$0x1]
  %297 = vrot.lane.b32.xlu0 %v295, 64
  %v298 = vpop.permute.xlu0 %297
  %vm300 = vcmask 647680
  %301 = vst.msk [vmem:[%s7] sm:$0x1] %vm300, %v298
  %s302 = scalar_lea.vmem [#allocation2], 5
  %v303 = vld [vmem:[%s302] ss:$8 sm:$0x1]
  %305 = vrot.lane.b32.xlu0 %v303, 80
  %v306 = vpop.permute.xlu0 %305
  %vm308 = vcmask 778880
  %309 = vst.msk [vmem:[%s7] sm:$0x1] %vm308, %v306
  %s310 = scalar_lea.vmem [#allocation2], 6
  %v311 = vld [vmem:[%s310] ss:$8 sm:$0x1]
  %313 = vrot.lane.b32.xlu0 %v311, 96
  %v314 = vpop.permute.xlu0 %313
  %vm316 = vcmask 910080
  %317 = vst.msk [vmem:[%s7] sm:$0x1] %vm316, %v314
  %s318 = scalar_lea.vmem [#allocation2], 7
  %v319 = vld [vmem:[%s318] ss:$8 sm:$0x1]
  %321 = vrot.lane.b32.xlu0 %v319, 112
  %v322 = vpop.permute.xlu0 %321
  %vm324 = vcmask 1041280
  %325 = vst.msk [vmem:[%s7] sm:$0x1] %vm324, %v322
  // Predicated region
  $region30: #{time_series_model_forward.1} parent=0 // pred_check
    _
  $region31: #{time_series_model_forward.1} parent=0 // pred_check_branch
    %327 = sbr.rel (0) target = $region33
  $region32: #{time_series_model_forward.1} parent=0 // pred_region
    _
  $region33: #{time_series_model_forward.1} parent=0 // pred_fallthru
    _
  // Predicated region
  $region34: #{time_series_model_forward.1} parent=0 // pred_check
    _
  $region35: #{time_series_model_forward.1} parent=0 // pred_check_branch
    %329 = sbr.rel (0) target = $region37
  $region36: #{time_series_model_forward.1} parent=0 // pred_region
    _
  $region37: #{time_series_model_forward.1} parent=0 // pred_fallthru
    _

</llo_original>
